<compile_context>
chip_gen: v7x
topology: tpu7x:2x2x1
jax: 0.10.0
libtpu: 0.0.40
codegen_flags: <defaults>
</compile_context>

<pallas_src>
import functools
import math

import jax
import jax.numpy as jnp
import numpy as np
from jax.experimental import pallas as pl
from jax.experimental.pallas import tpu as pltpu


# ----------------------------------------------------------------------------
# Pallas kernel: one grid step per batch element, whole (C, R) slab in VMEM.
# ----------------------------------------------------------------------------
def _trainer_kernel(x0_ref, h_ref, noise_ref, coef_ref, bias1_ref,
                    w1t_ref, w2t_ref, b2t_ref, loss_ref,
                    *, channel_type, re_weight):
    b = pl.program_id(0)

    # per-batch diffusion scalars from SMEM
    sab = coef_ref[b, 0]        # sqrt_alphas_bar[t_b]
    s1mab = coef_ref[b, 1]      # sqrt(1 - alphas_bar[t_b])
    sigma_sq = coef_ref[b, 2]   # 1 / 10**(snr/10)

    x0 = x0_ref[0]              # (C, R)  channels on sublanes, pixels on lanes
    h = h_ref[0]                # (C, R)  (already duplicated along H in glue)
    noise = noise_ref[0]        # (C, R)

    if channel_type == 'rayleigh':
        h_abs = jnp.abs(h)
        h2 = h_abs * h_abs
        inv_denom = 1.0 / (h2 + sigma_sq)      # single reciprocal, then vmuls
        h_signal = h2 * inv_denom
        h_noise = h_abs * inv_denom
        x_t = sab * (h_signal * x0) + s1mab * noise * h_noise
        h_cond = h_abs            # model sees |h| (concatenated) as in torch code
    elif channel_type == 'awgn':
        x_t = sab * x0 + s1mab * noise
        h_cond = h
        h_noise = jnp.ones_like(h)
    else:
        raise ValueError(channel_type)

    # synthetic denoiser: per-pixel MLP over channels, conditioned on temb(t)
    # (temb already folded into bias1 by the wrapper). One fused K=2C matmul:
    #   hid (HID, R) = W1^T (HID, 2C) @ [x_t ; h_cond] (2C, R) + bias1
    #   out (C, R)   = W2^T (C, HID)  @ SiLU(hid)              + b2^T
    stacked = jnp.concatenate([x_t, h_cond], axis=0)          # sublane concat (2C, R)
    hid = (jnp.dot(w1t_ref[...], stacked, preferred_element_type=jnp.float32)
           + bias1_ref[0])
    hid = hid * jax.nn.sigmoid(hid)                           # SiLU
    out = (jnp.dot(w2t_ref[...], hid, preferred_element_type=jnp.float32)
           + b2t_ref[...])

    if re_weight:
        diff = out - noise
    else:
        diff = h_noise * out - h_noise * noise

    # unscaled per-batch partial sum; summed over B and scaled once in JAX glue
    loss_ref[...] = jnp.broadcast_to(jnp.sum(diff * diff), loss_ref.shape)


# ----------------------------------------------------------------------------
# Wrapper
# ----------------------------------------------------------------------------
def channel_diffusion_trainer_loss(x0, h, noise, coefs, temb, w1, b1, w2, b2,
                                   *, channel_type, re_weight):
    """x0, h, noise: (B, C, R) channels-first, pixels-on-lanes;
    coefs: (B, 3) = [sqrt_ab[t], sqrt(1-ab[t]), sigma^2]; temb: (B, HID);
    w1: (2C, HID), b1: (1, HID), w2: (HID, C), b2: (1, C)."""
    B, C, R = x0.shape
    HID = w1.shape[1]

    # wrapper-side layout plumbing (free): transpose weights so matmul outputs
    # are lane-dense, and fold the timestep embedding into the first bias.
    w1t = jnp.transpose(w1)                       # (HID, 2C)
    w2t = jnp.transpose(w2)                       # (C, HID)
    bias1 = (b1 + temb)[:, :, None]               # (B, HID, 1)
    b2t = jnp.transpose(b2)                       # (C, 1)

    # TODO(synk): for production image sizes, cast inputs/weights to bf16 on
    # v6e/v7x (keep f32 matmul accumulate / f32 loss) and re-derive per-batch
    # tiling + vmem_limit_bytes for v7x's 64 MiB VMEM; at these tiny shapes
    # f32 end-to-end is both safe and overhead-free.

    kernel = functools.partial(_trainer_kernel,
                               channel_type=channel_type,
                               re_weight=re_weight)

    slab = pl.BlockSpec((1, C, R), lambda b: (b, 0, 0))

    partials = pl.pallas_call(
        kernel,
        out_shape=jax.ShapeDtypeStruct((B, 1, 1), jnp.float32),
        grid=(B,),
        in_specs=[
            slab,                                            # x0
            slab,                                            # h
            slab,                                            # noise
            pl.BlockSpec(memory_space=pltpu.SMEM),           # coefs (B, 3)
            pl.BlockSpec((1, HID, 1), lambda b: (b, 0, 0)),  # bias1 = b1 + temb(t)
            pl.BlockSpec((HID, 2 * C), lambda b: (0, 0)),    # W1^T
            pl.BlockSpec((C, HID), lambda b: (0, 0)),        # W2^T
            pl.BlockSpec((C, 1), lambda b: (0, 0)),          # b2^T
        ],
        out_specs=pl.BlockSpec((1, 1, 1), lambda b: (b, 0, 0)),
        compiler_params=pltpu.CompilerParams(
            dimension_semantics=("parallel",)),              # batch axis -> megacore
    )(x0, h, noise, coefs, bias1, w1t, w2t, b2t)

    # MSE = sum of per-batch partial sums / numel  (scale applied once)
    return jnp.sum(partials) / float(B * C * R)


# ----------------------------------------------------------------------------
# Pure-JAX reference (mirrors the PyTorch forward exactly, same synthetic model)
# ----------------------------------------------------------------------------
def reference_loss(x0, h, noise, coefs, temb, w1, b1, w2, b2,
                   *, channel_type, re_weight):
    sab = coefs[:, 0][:, None, None]
    s1mab = coefs[:, 1][:, None, None]
    sigma_sq = coefs[:, 2][:, None, None]
    if channel_type == 'rayleigh':
        h_abs = jnp.abs(h)
        h2 = h_abs * h_abs
        denom = h2 + sigma_sq
        h_signal = h2 / denom
        h_noise = h_abs / denom
        x_t = sab * (h_signal * x0) + s1mab * noise * h_noise
        h_cond = h_abs
    else:
        x_t = sab * x0 + s1mab * noise
        h_cond = h
        h_noise = jnp.ones_like(h)
    C = x0.shape[1]
    # per-pixel MLP in the original pixel-major convention
    x_t_r = jnp.transpose(x_t, (0, 2, 1))        # (B, R, C)
    h_cond_r = jnp.transpose(h_cond, (0, 2, 1))
    hid = x_t_r @ w1[:C] + h_cond_r @ w1[C:] + b1[None] + temb[:, None, :]
    hid = hid * jax.nn.sigmoid(hid)
    out = hid @ w2 + b2[None]
    noise_r = jnp.transpose(noise, (0, 2, 1))
    if re_weight:
        diff = out - noise_r
    else:
        h_noise_r = jnp.transpose(h_noise, (0, 2, 1))
        diff = h_noise_r * out - h_noise_r * noise_r
    return jnp.mean(diff * diff)


# ----------------------------------------------------------------------------
# Main
# ----------------------------------------------------------------------------
if __name__ == "__main__":
    # module config: noise_schedule=1 (linear betas), re_weight=True, rayleigh
    T = 100
    beta_1, beta_T = 1e-4, 0.02
    re_weight = True
    channel_type = 'rayleigh'
    snr = 10.0

    # diffusion schedule (glue; torch uses float64 buffers, f32 is close enough here)
    betas = jnp.linspace(beta_1, beta_T, T, dtype=jnp.float32)
    alphas = 1.0 - betas
    alphas_bar = jnp.cumprod(alphas)
    sqrt_alphas_bar = jnp.sqrt(alphas_bar)
    sqrt_one_minus_alphas_bar = jnp.sqrt(1.0 - alphas_bar)

    # small shapes
    B, C, H, W = 2, 8, 16, 16
    HID = 32
    R = H * W

    key = jax.random.PRNGKey(0)
    k_x, k_h, k_t, k_n, k_w1, k_b1, k_w2, k_b2, k_e = jax.random.split(key, 9)

    # PyTorch-convention inputs (NCHW); h has half the H (it gets cat'd along dim=2)
    x_0 = jax.random.normal(k_x, (B, C, H, W), dtype=jnp.float32)
    h_half = jax.random.normal(k_h, (B, C, H // 2, W), dtype=jnp.float32)

    # forward-internal randomness, made deterministic here
    t = jax.random.randint(k_t, (B,), 0, T)                    # torch.randint(T, (B,))
    noise = jax.random.normal(k_n, (B, C, H, W), jnp.float32)  # torch.randn_like(x_0)
    sigma_square = 1.0 / 10 ** (snr / 10)

    # synthetic model parameters (deterministic init)
    w1 = jax.random.normal(k_w1, (2 * C, HID), jnp.float32) * (1.0 / math.sqrt(2 * C))
    b1 = jax.random.normal(k_b1, (1, HID), jnp.float32) * 0.01
    w2 = jax.random.normal(k_w2, (HID, C), jnp.float32) * (1.0 / math.sqrt(HID))
    b2 = jax.random.normal(k_b2, (1, C), jnp.float32) * 0.01
    temb_table = jax.random.normal(k_e, (T, HID), jnp.float32) * 0.1

    # --- layout glue: NCHW -> (B, C, H*W); pixel axis rides the lanes ---
    h_full = jnp.concatenate([h_half, h_half], axis=2)         # torch.cat((h, h), dim=2)
    x0_cr = x_0.reshape(B, C, R)
    h_cr = h_full.reshape(B, C, R)
    noise_cr = noise.reshape(B, C, R)

    # per-batch scalars: extract(sqrt_alphas_bar, t, ...) etc.
    coefs = jnp.stack(
        [sqrt_alphas_bar[t],
         sqrt_one_minus_alphas_bar[t],
         jnp.full((B,), sigma_square, jnp.float32)],
        axis=1).astype(jnp.float32)                            # (B, 3)
    temb = temb_table[t]                                       # (B, HID)

    loss = channel_diffusion_trainer_loss(
        x0_cr, h_cr, noise_cr, coefs, temb, w1, b1, w2, b2,
        channel_type=channel_type, re_weight=re_weight)
    loss = jax.block_until_ready(loss)

    ref = jax.block_until_ready(reference_loss(
        x0_cr, h_cr, noise_cr, coefs, temb, w1, b1, w2, b2,
        channel_type=channel_type, re_weight=re_weight))

    np.testing.assert_allclose(np.asarray(loss), np.asarray(ref), rtol=1e-3, atol=1e-5)
    print("KERNEL_OK")
</pallas_src>

<mosaic_0001>
module attributes {stable_mosaic.version = 11 : i64} {
  func.func @_trainer_kernel(%arg0: i32, %arg1: memref<1x8x256xf32, #tpu.memory_space<vmem>>, %arg2: memref<1x8x256xf32, #tpu.memory_space<vmem>>, %arg3: memref<1x8x256xf32, #tpu.memory_space<vmem>>, %arg4: memref<2x3xf32, #tpu.memory_space<smem>>, %arg5: memref<1x32x1xf32, #tpu.memory_space<vmem>>, %arg6: memref<32x16xf32, #tpu.memory_space<vmem>>, %arg7: memref<8x32xf32, #tpu.memory_space<vmem>>, %arg8: memref<8x1xf32, #tpu.memory_space<vmem>>, %arg9: memref<1x1x1xf32, #tpu.memory_space<vmem>>) attributes {dimension_semantics = [#tpu.dimension_semantics<parallel>], iteration_bounds = array<i64: 2>, scalar_prefetch = 0 : i64, scratch_operands = 0 : i64, tpu.core_type = #tpu.core_type<tc>, window_params = [{transform_indices = @transform_0, window_bounds = array<i64: 1, 8, 256>}, {transform_indices = @transform_1, window_bounds = array<i64: 1, 8, 256>}, {transform_indices = @transform_2, window_bounds = array<i64: 1, 8, 256>}, {transform_indices = @transform_3, window_bounds = array<i64: 2, 3>}, {transform_indices = @transform_4, window_bounds = array<i64: 1, 32, 1>}, {pipeline_mode = #tpu.pipeline_mode<synchronous>, transform_indices = @transform_5, window_bounds = array<i64: 32, 16>}, {pipeline_mode = #tpu.pipeline_mode<synchronous>, transform_indices = @transform_6, window_bounds = array<i64: 8, 32>}, {pipeline_mode = #tpu.pipeline_mode<synchronous>, transform_indices = @transform_7, window_bounds = array<i64: 8, 1>}, {transform_indices = @transform_8, window_bounds = array<i64: 1, 1, 1>}]} {
    %0 = arith.index_cast %arg0 : i32 to index
    %c0 = arith.constant 0 : index
    %1 = memref.load %arg4[%0, %c0] : memref<2x3xf32, #tpu.memory_space<smem>>
    %2 = arith.index_cast %arg0 : i32 to index
    %c1 = arith.constant 1 : index
    %3 = memref.load %arg4[%2, %c1] : memref<2x3xf32, #tpu.memory_space<smem>>
    %4 = arith.index_cast %arg0 : i32 to index
    %c2 = arith.constant 2 : index
    %5 = memref.load %arg4[%4, %c2] : memref<2x3xf32, #tpu.memory_space<smem>>
    %c0_0 = arith.constant 0 : index
    %c0_1 = arith.constant 0 : index
    %c0_2 = arith.constant 0 : index
    %6 = vector.load %arg1[%c0_0, %c0_1, %c0_2] : memref<1x8x256xf32, #tpu.memory_space<vmem>>, vector<1x8x256xf32>
    %7 = vector.shape_cast %6 : vector<1x8x256xf32> to vector<8x256xf32>
    %c0_3 = arith.constant 0 : index
    %c0_4 = arith.constant 0 : index
    %c0_5 = arith.constant 0 : index
    %8 = vector.load %arg2[%c0_3, %c0_4, %c0_5] : memref<1x8x256xf32, #tpu.memory_space<vmem>>, vector<1x8x256xf32>
    %9 = vector.shape_cast %8 : vector<1x8x256xf32> to vector<8x256xf32>
    %c0_6 = arith.constant 0 : index
    %c0_7 = arith.constant 0 : index
    %c0_8 = arith.constant 0 : index
    %10 = vector.load %arg3[%c0_6, %c0_7, %c0_8] : memref<1x8x256xf32, #tpu.memory_space<vmem>>, vector<1x8x256xf32>
    %11 = vector.shape_cast %10 : vector<1x8x256xf32> to vector<8x256xf32>
    %12 = math.absf %9 : vector<8x256xf32>
    %13 = arith.mulf %12, %12 : vector<8x256xf32>
    %14 = vector.broadcast %5 : f32 to vector<8x256xf32>
    %15 = arith.addf %13, %14 : vector<8x256xf32>
    %cst = arith.constant 1.000000e+00 : f32
    %16 = vector.broadcast %cst : f32 to vector<8x256xf32>
    %17 = arith.divf %16, %15 : vector<8x256xf32>
    %18 = arith.mulf %13, %17 : vector<8x256xf32>
    %19 = arith.mulf %12, %17 : vector<8x256xf32>
    %20 = arith.mulf %18, %7 : vector<8x256xf32>
    %21 = vector.broadcast %1 : f32 to vector<8x256xf32>
    %22 = arith.mulf %21, %20 : vector<8x256xf32>
    %23 = vector.broadcast %3 : f32 to vector<8x256xf32>
    %24 = arith.mulf %23, %11 : vector<8x256xf32>
    %25 = arith.mulf %24, %19 : vector<8x256xf32>
    %26 = arith.addf %22, %25 : vector<8x256xf32>
    %27 = tpu.concatenate %26, %12 in 0 : vector<8x256xf32>, vector<8x256xf32> -> vector<16x256xf32>
    %c0_9 = arith.constant 0 : index
    %c0_10 = arith.constant 0 : index
    %28 = vector.load %arg6[%c0_9, %c0_10] : memref<32x16xf32, #tpu.memory_space<vmem>>, vector<32x16xf32>
    %cst_11 = arith.constant dense<0.000000e+00> : vector<32x256xf32>
    %29 = tpu.matmul %28, %27, %cst_11 {dimension_numbers = #tpu.dot_dimension_numbers<[1], [0], [0], [1], [0, 0, 1, 1], [], []>} : vector<32x16xf32>, vector<16x256xf32>, vector<32x256xf32> -> vector<32x256xf32>
    %c0_12 = arith.constant 0 : index
    %c0_13 = arith.constant 0 : index
    %c0_14 = arith.constant 0 : index
    %30 = vector.load %arg5[%c0_12, %c0_13, %c0_14] : memref<1x32x1xf32, #tpu.memory_space<vmem>>, vector<1x32x1xf32>
    %31 = vector.shape_cast %30 : vector<1x32x1xf32> to vector<32x1xf32>
    %32 = vector.broadcast %31 : vector<32x1xf32> to vector<32x256xf32>
    %33 = arith.addf %29, %32 : vector<32x256xf32>
    %34 = arith.negf %33 : vector<32x256xf32>
    %35 = math.exp %34 : vector<32x256xf32>
    %cst_15 = arith.constant 1.000000e+00 : f32
    %36 = vector.broadcast %cst_15 : f32 to vector<32x256xf32>
    %37 = arith.addf %36, %35 : vector<32x256xf32>
    %38 = arith.divf %36, %37 : vector<32x256xf32>
    %39 = arith.mulf %33, %38 : vector<32x256xf32>
    %c0_16 = arith.constant 0 : index
    %c0_17 = arith.constant 0 : index
    %40 = vector.load %arg7[%c0_16, %c0_17] : memref<8x32xf32, #tpu.memory_space<vmem>>, vector<8x32xf32>
    %cst_18 = arith.constant dense<0.000000e+00> : vector<8x256xf32>
    %41 = tpu.matmul %40, %39, %cst_18 {dimension_numbers = #tpu.dot_dimension_numbers<[1], [0], [0], [1], [0, 0, 1, 1], [], []>} : vector<8x32xf32>, vector<32x256xf32>, vector<8x256xf32> -> vector<8x256xf32>
    %c0_19 = arith.constant 0 : index
    %c0_20 = arith.constant 0 : index
    %42 = vector.load %arg8[%c0_19, %c0_20] : memref<8x1xf32, #tpu.memory_space<vmem>>, vector<8x1xf32>
    %43 = vector.broadcast %42 : vector<8x1xf32> to vector<8x256xf32>
    %44 = arith.addf %41, %43 : vector<8x256xf32>
    %45 = arith.subf %44, %11 : vector<8x256xf32>
    %46 = arith.mulf %45, %45 : vector<8x256xf32>
    %47 = vector.shape_cast %46 : vector<8x256xf32> to vector<1x8x256xf32>
    %cst_21 = arith.constant dense<0.000000e+00> : vector<1xf32>
    %48 = vector.multi_reduction <add>, %47, %cst_21 [1, 2] : vector<1x8x256xf32> to vector<1xf32>
    %49 = vector.shape_cast %48 : vector<1xf32> to vector<1x1x1xf32>
    %50 = vector.extract %49[0, 0, 0] : f32 from vector<1x1x1xf32>
    %51 = vector.broadcast %50 : f32 to vector<1x1x1xf32>
    %c0_22 = arith.constant 0 : index
    %c0_23 = arith.constant 0 : index
    %c0_24 = arith.constant 0 : index
    %52 = vector.load %arg9[%c0_22, %c0_23, %c0_24] : memref<1x1x1xf32, #tpu.memory_space<vmem>>, vector<1x1x1xf32>
    tpu.vector_store %arg9[%c0_22, %c0_23, %c0_24], %51 {strides = array<i32>} : memref<1x1x1xf32, #tpu.memory_space<vmem>>, vector<1x1x1xf32>,
    return
  }
  func.func @transform_0(%arg0: i32) -> (i32, i32, i32) {
    %c0_i32 = arith.constant 0 : i32
    %c0_i32_0 = arith.constant 0 : i32
    %c0_i32_1 = arith.constant 0 : i32
    return %arg0, %c0_i32, %c0_i32_0 : i32, i32, i32
  }
  func.func @transform_1(%arg0: i32) -> (i32, i32, i32) {
    %c0_i32 = arith.constant 0 : i32
    %c0_i32_0 = arith.constant 0 : i32
    %c0_i32_1 = arith.constant 0 : i32
    return %arg0, %c0_i32, %c0_i32_0 : i32, i32, i32
  }
  func.func @transform_2(%arg0: i32) -> (i32, i32, i32) {
    %c0_i32 = arith.constant 0 : i32
    %c0_i32_0 = arith.constant 0 : i32
    %c0_i32_1 = arith.constant 0 : i32
    return %arg0, %c0_i32, %c0_i32_0 : i32, i32, i32
  }
  func.func @transform_3(%arg0: i32) -> (i32, i32) {
    %c0_i32 = arith.constant 0 : i32
    %c0_i32_0 = arith.constant 0 : i32
    %c0_i32_1 = arith.constant 0 : i32
    return %c0_i32, %c0_i32_0 : i32, i32
  }
  func.func @transform_4(%arg0: i32) -> (i32, i32, i32) {
    %c0_i32 = arith.constant 0 : i32
    %c0_i32_0 = arith.constant 0 : i32
    %c0_i32_1 = arith.constant 0 : i32
    return %arg0, %c0_i32, %c0_i32_0 : i32, i32, i32
  }
  func.func @transform_5(%arg0: i32) -> (i32, i32) {
    %c0_i32 = arith.constant 0 : i32
    %c0_i32_0 = arith.constant 0 : i32
    %c0_i32_1 = arith.constant 0 : i32
    return %c0_i32, %c0_i32_0 : i32, i32
  }
  func.func @transform_6(%arg0: i32) -> (i32, i32) {
    %c0_i32 = arith.constant 0 : i32
    %c0_i32_0 = arith.constant 0 : i32
    %c0_i32_1 = arith.constant 0 : i32
    return %c0_i32, %c0_i32_0 : i32, i32
  }
  func.func @transform_7(%arg0: i32) -> (i32, i32) {
    %c0_i32 = arith.constant 0 : i32
    %c0_i32_0 = arith.constant 0 : i32
    %c0_i32_1 = arith.constant 0 : i32
    return %c0_i32, %c0_i32_0 : i32, i32
  }
  func.func @transform_8(%arg0: i32) -> (i32, i32, i32) {
    %c0_i32 = arith.constant 0 : i32
    %c0_i32_0 = arith.constant 0 : i32
    %c0_i32_1 = arith.constant 0 : i32
    return %arg0, %c0_i32, %c0_i32_0 : i32, i32, i32
  }
}

</mosaic_0001>

<llo_original>
// kernel: tpu_custom_call.1
$region0: #{tpu_custom_call.1}
  #allocation0 [shape = 'u32[]', space=smem, size = 0x4, offset = 0x4, fixed_abs, tag = 'smem constant byte address 0x4 - core index']
  #allocation1 [shape = 'u32[144,128]{1,0:T(1,128)}', space=vmem, size = 0x12000, scoped, tag = 'internal scratch']
  %s0 = inlined_call_operand.vmem [shape: f32[2,8,256], index: 0, kind: input, shape index: {}]
  %s1 = inlined_call_operand.vmem [shape: f32[2,8,256], index: 1, kind: input, shape index: {}]
  %s2 = inlined_call_operand.vmem [shape: f32[2,8,256], index: 2, kind: input, shape index: {}]
  %s3 = inlined_call_operand.vmem [shape: f32[2,3], index: 3, kind: input, shape index: {}]
  %s4 = inlined_call_operand.vmem [shape: f32[2,32,1], index: 4, kind: input, shape index: {}]
  %s5 = inlined_call_operand.vmem [shape: f32[32,16], index: 5, kind: input, shape index: {}]
  %s6 = inlined_call_operand.vmem [shape: f32[8,32], index: 6, kind: input, shape index: {}]
  %s7 = inlined_call_operand.vmem [shape: f32[8,1], index: 7, kind: input, shape index: {}]
  %s8 = inlined_call_operand.vmem [shape: f32[2,1,1], index: 8, kind: output, shape index: {}]
  %s9 = sld [smem:[#allocation0]]
  $region69: #{tpu_custom_call.1} parent=0
    _
  %s11 = ssub.s32 1, %s9
  %s12 = scalar_select 0, %s11, %s9
  $region1: #{tpu_custom_call.1} parent=0
    #allocation2 [shape = 'u8[1024]{0}', space=smem, size = 0x400, scoped, tag = 'input window, operand 3, single buffered']
    #allocation3 [shape = 's32[2]{0}', space=sflag, size = 0x8, scoped, tag = 'scoped memory for tpu_custom_call.1']
    %13 = vsyncpa [#allocation3], 0
    loop: start=0, step=1, limit=4
    $region2: #{tpu_custom_call.1} parent=1 // loop_pre_header
      _
    $region3: #{tpu_custom_call.1} parent=1 // loop_header
      %s15 = sphi 0, %s19
      %p16 = scmp.ge.s32.totalorder %s15, 4
      %s25 = sphi 0, %s27
      %s28 = sphi 0, %s25
      %s29 = sphi 0, %s28
      %s45 = sphi 0, %s29
      %s51 = sphi 0, %s53
      %s54 = sphi 0, %s51
      %s55 = sphi 0, %s54
      %s71 = sphi 0, %s55
      %s77 = sphi 0, %s79
      %s80 = sphi 0, %s77
      %s81 = sphi 0, %s80
      %s97 = sphi 0, %s81
      %s101 = sphi 0, %s101
      %s103 = sphi 0, %s101
      %s104 = sphi 0, %s103
      %s118 = sphi 0, %s104
      %s124 = sphi 0, %s126
      %s127 = sphi 0, %s124
      %s128 = sphi 0, %s127
      %s144 = sphi 0, %s128
      %s148 = sphi 0, %s148
      %s150 = sphi 0, %s148
      %s151 = sphi 0, %s150
      %s165 = sphi 0, %s151
      %s169 = sphi 0, %s169
      %s171 = sphi 0, %s169
      %s172 = sphi 0, %s171
      %s186 = sphi 0, %s172
      %s190 = sphi 0, %s190
      %s192 = sphi 0, %s190
      %s193 = sphi 0, %s192
      %s207 = sphi 0, %s193
      %s213 = sphi 0, %s215
      %s216 = sphi 0, %s213
      %s217 = sphi 0, %s216
      %s233 = sphi 0, %s217
    $region4: #{tpu_custom_call.1} parent=1 // loop_header_branch
      %18 = sbr.rel (%p16) target = $region8
    $region5: #{tpu_custom_call.1} parent=1 // loop_body
      %s20 = ssub.s32 %s15, 1
      %s21 = ssub.s32 %s15, 2
      %s22 = sadd.s32 %s15, 1
      %s23 = ssub.s32 %s15, %s22
      %p24 = scmp.eq.s32.totalorder %s23, 0
      %s26 = sadd.s32 %s25, 1
      %s27 = scalar_select %p24, %s25, %s26
      %p30 = pneg %p24
      %p31 = scmp.eq.s32.totalorder %s15, 1
      %p32 = por %p30, %p31
      %p33 = scmp.ne.s32.totalorder %s25, %s28
      %p34 = scmp.eq.s32.totalorder %s15, 0
      %p35 = por %p33, %p34
      %p36 = scmp.ne.s32.totalorder %s25, %s28
      %p37 = scmp.eq.s32.totalorder %s20, 1
      %p38 = por %p36, %p37
      %p39 = scmp.ne.s32.totalorder %s28, %s29
      %p40 = scmp.eq.s32.totalorder %s20, 0
      %p41 = por %p39, %p40
      %p42 = scmp.ne.s32.totalorder %s28, %s29
      %p43 = scmp.eq.s32.totalorder %s21, 1
      %p44 = por %p42, %p43
      %p46 = scmp.ne.s32.totalorder %s29, %s45
      %p47 = scmp.eq.s32.totalorder %s21, 0
      %p48 = por %p46, %p47
      %s49 = ssub.s32 %s15, %s22
      %p50 = scmp.eq.s32.totalorder %s49, 0
      %s52 = sadd.s32 %s51, 1
      %s53 = scalar_select %p50, %s51, %s52
      %p56 = pneg %p50
      %p57 = scmp.eq.s32.totalorder %s15, 1
      %p58 = por %p56, %p57
      %p59 = scmp.ne.s32.totalorder %s51, %s54
      %p60 = scmp.eq.s32.totalorder %s15, 0
      %p61 = por %p59, %p60
      %p62 = scmp.ne.s32.totalorder %s51, %s54
      %p63 = scmp.eq.s32.totalorder %s20, 1
      %p64 = por %p62, %p63
      %p65 = scmp.ne.s32.totalorder %s54, %s55
      %p66 = scmp.eq.s32.totalorder %s20, 0
      %p67 = por %p65, %p66
      %p68 = scmp.ne.s32.totalorder %s54, %s55
      %p69 = scmp.eq.s32.totalorder %s21, 1
      %p70 = por %p68, %p69
      %p72 = scmp.ne.s32.totalorder %s55, %s71
      %p73 = scmp.eq.s32.totalorder %s21, 0
      %p74 = por %p72, %p73
      %s75 = ssub.s32 %s15, %s22
      %p76 = scmp.eq.s32.totalorder %s75, 0
      %s78 = sadd.s32 %s77, 1
      %s79 = scalar_select %p76, %s77, %s78
      %p82 = pneg %p76
      %p83 = scmp.eq.s32.totalorder %s15, 1
      %p84 = por %p82, %p83
      %p85 = scmp.ne.s32.totalorder %s77, %s80
      %p86 = scmp.eq.s32.totalorder %s15, 0
      %p87 = por %p85, %p86
      %p88 = scmp.ne.s32.totalorder %s77, %s80
      %p89 = scmp.eq.s32.totalorder %s20, 1
      %p90 = por %p88, %p89
      %p91 = scmp.ne.s32.totalorder %s80, %s81
      %p92 = scmp.eq.s32.totalorder %s20, 0
      %p93 = por %p91, %p92
      %p94 = scmp.ne.s32.totalorder %s80, %s81
      %p95 = scmp.eq.s32.totalorder %s21, 1
      %p96 = por %p94, %p95
      %p98 = scmp.ne.s32.totalorder %s81, %s97
      %p99 = scmp.eq.s32.totalorder %s21, 0
      %p100 = por %p98, %p99
      %s102 = sadd.s32 %s101, 1
      %p105 = scmp.eq.s32.totalorder %s15, 1
      %p106 = scmp.ne.s32.totalorder %s101, %s103
      %p107 = scmp.eq.s32.totalorder %s15, 0
      %p108 = por %p106, %p107
      %p109 = scmp.ne.s32.totalorder %s101, %s103
      %p110 = scmp.eq.s32.totalorder %s20, 1
      %p111 = por %p109, %p110
      %p112 = scmp.ne.s32.totalorder %s103, %s104
      %p113 = scmp.eq.s32.totalorder %s20, 0
      %p114 = por %p112, %p113
      %p115 = scmp.ne.s32.totalorder %s103, %s104
      %p116 = scmp.eq.s32.totalorder %s21, 1
      %p117 = por %p115, %p116
      %p119 = scmp.ne.s32.totalorder %s104, %s118
      %p120 = scmp.eq.s32.totalorder %s21, 0
      %p121 = por %p119, %p120
      %s122 = ssub.s32 %s15, %s22
      %p123 = scmp.eq.s32.totalorder %s122, 0
      %s125 = sadd.s32 %s124, 1
      %s126 = scalar_select %p123, %s124, %s125
      %p129 = pneg %p123
      %p130 = scmp.eq.s32.totalorder %s15, 1
      %p131 = por %p129, %p130
      %p132 = scmp.ne.s32.totalorder %s124, %s127
      %p133 = scmp.eq.s32.totalorder %s15, 0
      %p134 = por %p132, %p133
      %p135 = scmp.ne.s32.totalorder %s124, %s127
      %p136 = scmp.eq.s32.totalorder %s20, 1
      %p137 = por %p135, %p136
      %p138 = scmp.ne.s32.totalorder %s127, %s128
      %p139 = scmp.eq.s32.totalorder %s20, 0
      %p140 = por %p138, %p139
      %p141 = scmp.ne.s32.totalorder %s127, %s128
      %p142 = scmp.eq.s32.totalorder %s21, 1
      %p143 = por %p141, %p142
      %p145 = scmp.ne.s32.totalorder %s128, %s144
      %p146 = scmp.eq.s32.totalorder %s21, 0
      %p147 = por %p145, %p146
      %s149 = sadd.s32 %s148, 1
      %p152 = scmp.eq.s32.totalorder %s15, 1
      %p153 = scmp.ne.s32.totalorder %s148, %s150
      %p154 = scmp.eq.s32.totalorder %s15, 0
      %p155 = por %p153, %p154
      %p156 = scmp.ne.s32.totalorder %s148, %s150
      %p157 = scmp.eq.s32.totalorder %s20, 1
      %p158 = por %p156, %p157
      %p159 = scmp.ne.s32.totalorder %s150, %s151
      %p160 = scmp.eq.s32.totalorder %s20, 0
      %p161 = por %p159, %p160
      %p162 = scmp.ne.s32.totalorder %s150, %s151
      %p163 = scmp.eq.s32.totalorder %s21, 1
      %p164 = por %p162, %p163
      %p166 = scmp.ne.s32.totalorder %s151, %s165
      %p167 = scmp.eq.s32.totalorder %s21, 0
      %p168 = por %p166, %p167
      %s170 = sadd.s32 %s169, 1
      %p173 = scmp.eq.s32.totalorder %s15, 1
      %p174 = scmp.ne.s32.totalorder %s169, %s171
      %p175 = scmp.eq.s32.totalorder %s15, 0
      %p176 = por %p174, %p175
      %p177 = scmp.ne.s32.totalorder %s169, %s171
      %p178 = scmp.eq.s32.totalorder %s20, 1
      %p179 = por %p177, %p178
      %p180 = scmp.ne.s32.totalorder %s171, %s172
      %p181 = scmp.eq.s32.totalorder %s20, 0
      %p182 = por %p180, %p181
      %p183 = scmp.ne.s32.totalorder %s171, %s172
      %p184 = scmp.eq.s32.totalorder %s21, 1
      %p185 = por %p183, %p184
      %p187 = scmp.ne.s32.totalorder %s172, %s186
      %p188 = scmp.eq.s32.totalorder %s21, 0
      %p189 = por %p187, %p188
      %s191 = sadd.s32 %s190, 1
      %p194 = scmp.eq.s32.totalorder %s15, 1
      %p195 = scmp.ne.s32.totalorder %s190, %s192
      %p196 = scmp.eq.s32.totalorder %s15, 0
      %p197 = por %p195, %p196
      %p198 = scmp.ne.s32.totalorder %s190, %s192
      %p199 = scmp.eq.s32.totalorder %s20, 1
      %p200 = por %p198, %p199
      %p201 = scmp.ne.s32.totalorder %s192, %s193
      %p202 = scmp.eq.s32.totalorder %s20, 0
      %p203 = por %p201, %p202
      %p204 = scmp.ne.s32.totalorder %s192, %s193
      %p205 = scmp.eq.s32.totalorder %s21, 1
      %p206 = por %p204, %p205
      %p208 = scmp.ne.s32.totalorder %s193, %s207
      %p209 = scmp.eq.s32.totalorder %s21, 0
      %p210 = por %p208, %p209
      %s211 = ssub.s32 %s15, %s22
      %p212 = scmp.eq.s32.totalorder %s211, 0
      %s214 = sadd.s32 %s213, 1
      %s215 = scalar_select %p212, %s213, %s214
      %p218 = pneg %p212
      %p219 = scmp.eq.s32.totalorder %s15, 1
      %p220 = por %p218, %p219
      %p221 = scmp.ne.s32.totalorder %s213, %s216
      %p222 = scmp.eq.s32.totalorder %s15, 0
      %p223 = por %p221, %p222
      %p224 = scmp.ne.s32.totalorder %s213, %s216
      %p225 = scmp.eq.s32.totalorder %s20, 1
      %p226 = por %p224, %p225
      %p227 = scmp.ne.s32.totalorder %s216, %s217
      %p228 = scmp.eq.s32.totalorder %s20, 0
      %p229 = por %p227, %p228
      %p230 = scmp.ne.s32.totalorder %s216, %s217
      %p231 = scmp.eq.s32.totalorder %s21, 1
      %p232 = por %p230, %p231
      %p234 = scmp.ne.s32.totalorder %s217, %s233
      %p235 = scmp.eq.s32.totalorder %s21, 0
      %p236 = por %p234, %p235
      %p237 = scmp.le.s32.totalorder 1, %s15
      %p238 = scmp.lt.s32.totalorder %s15, 3
      %p239 = pnand %p237, %p238
      %p240 = pneg %p239
      // Predicated region
      $region9: #{tpu_custom_call.1} parent=5 // pred_check
        _
      $region10: #{tpu_custom_call.1} parent=5 // pred_check_branch
        %242 = sbr.rel (%p239) target = $region12
      $region11: #{tpu_custom_call.1} parent=5 // pred_region
        %s243 = ssub.s32 %s15, 1
        // Predicated region
        $region13: #{tpu_custom_call.1} parent=11 // pred_check
          %p244 = pneg %p114
        $region14: #{tpu_custom_call.1} parent=11 // pred_check_branch
          %246 = sbr.rel (%p244) target = $region16
        $region15: #{tpu_custom_call.1} parent=11 // pred_region
          %s248 = ssub.s32 32, 32
          %249 = vsyncadd [#allocation3], %s248
          %s251 = sshll.u32 %s3, 4
          %s252 = int_to_ptr.vmem [resolvable:$true] %s251
          %254 = dma.vmem_to_smem %s252, 32, [#allocation2], [#allocation3]
        $region16: #{tpu_custom_call.1} parent=11 // pred_fallthru
          _
        // Predicated region
        $region17: #{tpu_custom_call.1} parent=11 // pred_check
          %p255 = pneg %p161
        $region18: #{tpu_custom_call.1} parent=11 // pred_check_branch
          %257 = sbr.rel (%p255) target = $region20
        $region19: #{tpu_custom_call.1} parent=11 // pred_region
          _
        $region20: #{tpu_custom_call.1} parent=11 // pred_fallthru
          _
        // Predicated region
        $region21: #{tpu_custom_call.1} parent=11 // pred_check
          %p258 = pneg %p182
        $region22: #{tpu_custom_call.1} parent=11 // pred_check_branch
          %260 = sbr.rel (%p258) target = $region24
        $region23: #{tpu_custom_call.1} parent=11 // pred_region
          _
        $region24: #{tpu_custom_call.1} parent=11 // pred_fallthru
          _
        // Predicated region
        $region25: #{tpu_custom_call.1} parent=11 // pred_check
          %p261 = pneg %p203
        $region26: #{tpu_custom_call.1} parent=11 // pred_check_branch
          %263 = sbr.rel (%p261) target = $region28
        $region27: #{tpu_custom_call.1} parent=11 // pred_region
          _
        $region28: #{tpu_custom_call.1} parent=11 // pred_fallthru
          _
      $region12: #{tpu_custom_call.1} parent=5 // pred_fallthru
        _
      %p264 = scmp.lt.s32.totalorder %s15, 2
      // Predicated region
      $region29: #{tpu_custom_call.1} parent=5 // pred_check
        %p265 = pneg %p264
      $region30: #{tpu_custom_call.1} parent=5 // pred_check_branch
        %267 = sbr.rel (%p265) target = $region32
      $region31: #{tpu_custom_call.1} parent=5 // pred_region
        // Predicated region
        $region33: #{tpu_custom_call.1} parent=31 // pred_check
          %p268 = pneg %p35
        $region34: #{tpu_custom_call.1} parent=31 // pred_check_branch
          %270 = sbr.rel (%p268) target = $region36
        $region35: #{tpu_custom_call.1} parent=31 // pred_region
          %p271 = scmp.lt.s32.totalorder %s15, 1
          %s272 = scalar_select %p271, %s15, 1
          %s273 = smul.addr %s272, 2
          %s274 = smul.addr %s273, 8
          %s275 = scalar_lea.vmem %s0, %s274
        $region36: #{tpu_custom_call.1} parent=31 // pred_fallthru
          _
        // Predicated region
        $region37: #{tpu_custom_call.1} parent=31 // pred_check
          %p276 = pneg %p61
        $region38: #{tpu_custom_call.1} parent=31 // pred_check_branch
          %278 = sbr.rel (%p276) target = $region40
        $region39: #{tpu_custom_call.1} parent=31 // pred_region
          %p279 = scmp.lt.s32.totalorder %s15, 1
          %s280 = scalar_select %p279, %s15, 1
          %s281 = smul.addr %s280, 2
          %s282 = smul.addr %s281, 8
          %s283 = scalar_lea.vmem %s1, %s282
        $region40: #{tpu_custom_call.1} parent=31 // pred_fallthru
          _
        // Predicated region
        $region41: #{tpu_custom_call.1} parent=31 // pred_check
          %p284 = pneg %p87
        $region42: #{tpu_custom_call.1} parent=31 // pred_check_branch
          %286 = sbr.rel (%p284) target = $region44
        $region43: #{tpu_custom_call.1} parent=31 // pred_region
          %p287 = scmp.lt.s32.totalorder %s15, 1
          %s288 = scalar_select %p287, %s15, 1
          %s289 = smul.addr %s288, 2
          %s290 = smul.addr %s289, 8
          %s291 = scalar_lea.vmem %s2, %s290
        $region44: #{tpu_custom_call.1} parent=31 // pred_fallthru
          _
        // Predicated region
        $region45: #{tpu_custom_call.1} parent=31 // pred_check
          %p292 = pneg %p134
        $region46: #{tpu_custom_call.1} parent=31 // pred_check_branch
          %294 = sbr.rel (%p292) target = $region48
        $region47: #{tpu_custom_call.1} parent=31 // pred_region
          %p295 = scmp.lt.s32.totalorder %s15, 1
          %s296 = scalar_select %p295, %s15, 1
          %s297 = smul.addr %s296, 4
          %s298 = smul.addr %s297, 8
          %s299 = scalar_lea.vmem %s4, %s298
        $region48: #{tpu_custom_call.1} parent=31 // pred_fallthru
          _
      $region32: #{tpu_custom_call.1} parent=5 // pred_fallthru
        _
      %p300 = scmp.le.s32.totalorder 1, %s15
      %p301 = scmp.lt.s32.totalorder %s15, 3
      %p302 = pnand %p300, %p301
      %p303 = pneg %p302
      // Predicated region
      $region49: #{tpu_custom_call.1} parent=5 // pred_check
        _
      $region50: #{tpu_custom_call.1} parent=5 // pred_check_branch
        %305 = sbr.rel (%p302) target = $region52
      $region51: #{tpu_custom_call.1} parent=5 // pred_region
        %s306 = ssub.s32 %s15, 1
        // Predicated region
        $region53: #{tpu_custom_call.1} parent=51 // pred_check
          %p307 = pneg %p114
        $region54: #{tpu_custom_call.1} parent=51 // pred_check_branch
          %309 = sbr.rel (%p307) target = $region56
        $region55: #{tpu_custom_call.1} parent=51 // pred_region
          %310 = dma.done [#allocation3], 32
        $region56: #{tpu_custom_call.1} parent=51 // pred_fallthru
          _
        %311 = sfence
        %p312 = scmp.lt.s32.totalorder %s20, 1
        %s313 = scalar_select %p312, %s20, 1
        %s314 = smul.addr %s313, 2
        %s315 = smul.addr %s314, 8
        %s316 = scalar_lea.vmem %s0, %s315
        %p317 = pneg %p41
        %p318 = pneg %p38
        %p319 = scmp.lt.s32.totalorder %s20, 1
        %s320 = scalar_select %p319, %s20, 1
        %s321 = smul.addr %s320, 2
        %s322 = smul.addr %s321, 8
        %s323 = scalar_lea.vmem %s1, %s322
        %p324 = pneg %p67
        %p325 = pneg %p64
        %p326 = scmp.lt.s32.totalorder %s20, 1
        %s327 = scalar_select %p326, %s20, 1
        %s328 = smul.addr %s327, 2
        %s329 = smul.addr %s328, 8
        %s330 = scalar_lea.vmem %s2, %s329
        %p331 = pneg %p93
        %p332 = pneg %p90
        %p333 = pneg %p114
        %p334 = pneg %p111
        %p335 = scmp.lt.s32.totalorder %s20, 1
        %s336 = scalar_select %p335, %s20, 1
        %s337 = smul.addr %s336, 4
        %s338 = smul.addr %s337, 8
        %s339 = scalar_lea.vmem %s4, %s338
        %p340 = pneg %p140
        %p341 = pneg %p137
        %p342 = pneg %p161
        %p343 = pneg %p158
        %p344 = pneg %p182
        %p345 = pneg %p179
        %p346 = pneg %p203
        %p347 = pneg %p200
        %p348 = pneg %p229
        %p349 = pneg %p226
        %p350 = scmp.lt.s32.totalorder %s20, 1
        %s351 = scalar_select %p350, %s20, 1
        %s352 = scalar_lea.vmem %s8, %s351
        %p353 = scmp.lt.s32.totalorder %s20, 1
        %s354 = scalar_select %p353, %s20, 1
        %s355 = smul.addr %s354, 2
        %s356 = smul.addr %s355, 8
        %s357 = scalar_lea.vmem %s0, %s356
        %p358 = scmp.lt.s32.totalorder %s20, 1
        %s359 = scalar_select %p358, %s20, 1
        %s360 = smul.addr %s359, 2
        %s361 = smul.addr %s360, 8
        %s362 = scalar_lea.vmem %s1, %s361
        %p363 = scmp.lt.s32.totalorder %s20, 1
        %s364 = scalar_select %p363, %s20, 1
        %s365 = smul.addr %s364, 2
        %s366 = smul.addr %s365, 8
        %s367 = scalar_lea.vmem %s2, %s366
        %p368 = scmp.lt.s32.totalorder %s20, 1
        %s369 = scalar_select %p368, %s20, 1
        %s370 = smul.addr %s369, 4
        %s371 = smul.addr %s370, 8
        %s372 = scalar_lea.vmem %s4, %s371
        %p373 = scmp.lt.s32.totalorder %s20, 1
        %s374 = scalar_select %p373, %s20, 1
        %s375 = scalar_lea.vmem %s8, %s374
        %s376 = smul.u32 %s20, 128
        %s377 = sld [smem:[#allocation2 + %s376]]
        %s378 = sadd.s32 %s376, 1
        %s379 = sld [smem:[#allocation2 + %s378]]
        %s380 = sadd.s32 %s376, 2
        %s381 = sld [smem:[#allocation2 + %s380]]
        %v382 = vld [vmem:[%s357] sm:$0xff]
        %v383 = vld [vmem:[%s357 + $0x8] sm:$0xff]
        %v384 = vld [vmem:[%s362] sm:$0xff]
        %v385 = vld [vmem:[%s362 + $0x8] sm:$0xff]
        %v386 = vld [vmem:[%s367] sm:$0xff]
        %v387 = vld [vmem:[%s367 + $0x8] sm:$0xff]
        %v388 = vand.u32 2147483647, %v384
        %v389 = vand.u32 2147483647, %v385
        %v390 = vmul.f32 %v388, %v388
        %v391 = vmul.f32 %v389, %v389
        %v392 = vstv %s381
        %v393 = vadd.f32 %v390, %v392
        %v394 = vadd.f32 %v391, %v392
        %v395 = vrcp.pop %v393
        %v396 = vmul.f32 1.0, %v395
        %v397 = vrcp.pop %v394
        %v398 = vmul.f32 1.0, %v397
        %v399 = vmul.f32 %v390, %v396
        %v400 = vmul.f32 %v391, %v398
        %v401 = vmul.f32 %v388, %v396
        %v402 = vmul.f32 %v389, %v398
        %v403 = vmul.f32 %v399, %v382
        %v404 = vmul.f32 %v400, %v383
        %v405 = vstv %s377
        %v406 = vmul.f32 %v405, %v403
        %v407 = vmul.f32 %v405, %v404
        %v408 = vstv %s379
        %v409 = vmul.f32 %v408, %v386
        %v410 = vmul.f32 %v408, %v387
        %v411 = vmul.f32 %v409, %v401
        %v412 = vmul.f32 %v410, %v402
        %v413 = vadd.f32 %v406, %v411
        %v414 = vadd.f32 %v407, %v412
        %v415 = vld [vmem:[%s5] sm:$0xff]
        %v416 = vld [vmem:[%s5 + $0x8] sm:$0xff]
        %v417 = vld [vmem:[%s5 + $0x10] sm:$0xff]
        %v418 = vld [vmem:[%s5 + $0x18] sm:$0xff]
        %v419 = vld [vmem:[%s372] sm:$0xff]
        %v420 = vld [vmem:[%s372 + $0x8] sm:$0xff]
        %v421 = vld [vmem:[%s372 + $0x10] sm:$0xff]
        %v422 = vld [vmem:[%s372 + $0x18] sm:$0xff]
        %424 = vset.pattern.permute.xlu0 0
        %425 = vperm.xlu0 %424, %v419
        %v426 = vpop.permute.xlu0 %425
        %429 = vset.pattern.permute.xlu0 0
        %430 = vperm.xlu0 %429, %v420
        %v431 = vpop.permute.xlu0 %430
        %434 = vset.pattern.permute.xlu0 0
        %435 = vperm.xlu0 %434, %v421
        %v436 = vpop.permute.xlu0 %435
        %439 = vset.pattern.permute.xlu0 0
        %440 = vperm.xlu0 %439, %v422
        %v441 = vpop.permute.xlu0 %440
        %vm443 = vcmask 130048
        %v445 = vsel %vm443, %v415, 0
        %v448 = vsel %vm443, %v416, 0
        %v451 = vsel %vm443, %v417, 0
        %v454 = vsel %vm443, %v418, 0
        %456 = vmatprep.subr.mxu0 %v414
        %457 = vmatpush1.msra.mxu0 %v413
        %458 = vmatprep.subr.mxu0 %v389
        %459 = vmatpush1.msra.mxu0 %v388
        %460 = vmatprep.subr.mxu0 0.0
        %461 = vmatpush1.msra.mxu0 0.0
        %462 = vmatprep.subr.mxu0 0.0
        %463 = vmatpush1.msra.mxu0 0.0
        %464 = vmatprep.subr.mxu0 0.0
        %465 = vmatpush1.msra.mxu0 0.0
        %466 = vmatprep.subr.mxu0 0.0
        %467 = vmatpush1.msra.mxu0 0.0
        %468 = vmatprep.subr.mxu0 0.0
        %469 = vmatpush1.msra.mxu0 0.0
        %470 = vmatprep.subr.mxu0 0.0
        %471 = vmatpush1.msra.mxu0 0.0
        %472 = vmatprep.subr.mxu0 0.0
        %473 = vmatpush1.msra.mxu0 0.0
        %474 = vmatprep.subr.mxu0 0.0
        %475 = vmatpush1.msra.mxu0 0.0
        %476 = vmatprep.subr.mxu0 0.0
        %477 = vmatpush1.msra.mxu0 0.0
        %478 = vmatprep.subr.mxu0 0.0
        %479 = vmatpush1.msra.mxu0 0.0
        %480 = vmatprep.subr.mxu0 0.0
        %481 = vmatpush1.msra.mxu0 0.0
        %482 = vmatprep.subr.mxu0 0.0
        %483 = vmatpush1.msra.mxu0 0.0
        %484 = vmatprep.subr.mxu0 0.0
        %485 = vmatpush1.msra.mxu0 0.0
        %486 = vmatprep.subr.mxu0 0.0
        %487 = vmatpush1.msra.mxu0 0.0
        %488 = vmatprep.subr.mxu0 0.0
        %489 = vmatpush1.msra.mxu0 0.0
        %490 = vmatprep.subr.mxu0 0.0
        %491 = vmatpush1.msra.mxu0 0.0
        %492 = vmatprep.subr.mxu0 0.0
        %493 = vmatpush1.msra.mxu0 0.0
        %494 = vmatprep.subr.mxu0 0.0
        %495 = vmatpush1.msra.mxu0 0.0
        %496 = vmatprep.subr.mxu0 0.0
        %497 = vmatpush1.msra.mxu0 0.0
        %498 = vmatprep.subr.mxu0 0.0
        %499 = vmatpush1.msra.mxu0 0.0
        %500 = vmatprep.subr.mxu0 0.0
        %501 = vmatpush1.msra.mxu0 0.0
        %502 = vmatprep.subr.mxu0 0.0
        %503 = vmatpush1.msra.mxu0 0.0
        %504 = vmatprep.subr.mxu0 0.0
        %505 = vmatpush1.msra.mxu0 0.0
        %506 = vmatprep.subr.mxu0 0.0
        %507 = vmatpush1.msra.mxu0 0.0
        %508 = vmatprep.subr.mxu0 0.0
        %509 = vmatpush1.msra.mxu0 0.0
        %510 = vmatprep.subr.mxu0 0.0
        %511 = vmatpush1.msra.mxu0 0.0
        %512 = vmatprep.subr.mxu0 0.0
        %513 = vmatpush1.msra.mxu0 0.0
        %514 = vmatprep.subr.mxu0 0.0
        %515 = vmatpush1.msra.mxu0 0.0
        %516 = vmatprep.subr.mxu0 0.0
        %517 = vmatpush1.msra.mxu0 0.0
        %518 = vmatprep.subr.mxu0 0.0
        %519 = vmatpush1.msra.mxu0 0.0
        %520 = vmatprep.mubr.f32.mxu0 0.0
        %521 = vmatmul.mubr.f32.gmra.mrb[0].mxu0 %v445
        %v522 = vpop.f32.mrb[0].mxu0
        %v523 = vadd.f32 %v426, %v522
        %v524 = vpop.f32.mrb[0].mxu0
        %v525 = vadd.f32 %v426, %v524
        %526 = vmatprep.mubr.f32.mxu0 0.0
        %527 = vmatmul.mubr.f32.gmra.mrb[0].mxu0 %v448
        %v528 = vpop.f32.mrb[0].mxu0
        %v529 = vadd.f32 %v431, %v528
        %v530 = vpop.f32.mrb[0].mxu0
        %v531 = vadd.f32 %v431, %v530
        %532 = vmatprep.mubr.f32.mxu0 0.0
        %533 = vmatmul.mubr.f32.gmra.mrb[0].mxu0 %v451
        %v534 = vpop.f32.mrb[0].mxu0
        %v535 = vadd.f32 %v436, %v534
        %v536 = vpop.f32.mrb[0].mxu0
        %v537 = vadd.f32 %v436, %v536
        %538 = vmatprep.mubr.f32.mxu0 0.0
        %539 = vmatmul.mubr.f32.gmra.mrb[0].mxu0 %v454
        %v540 = vpop.f32.mrb[0].mxu0
        %v541 = vadd.f32 %v441, %v540
        %v542 = vpop.f32.mrb[0].mxu0
        %v543 = vadd.f32 %v441, %v542
        %544 = vdwg.mxu0
        %v545 = vxor.u32 %v523, 2147483648
        %v546 = vxor.u32 %v525, 2147483648
        %v547 = vxor.u32 %v529, 2147483648
        %v548 = vxor.u32 %v531, 2147483648
        %v549 = vxor.u32 %v535, 2147483648
        %v550 = vxor.u32 %v537, 2147483648
        %v551 = vxor.u32 %v541, 2147483648
        %v552 = vxor.u32 %v543, 2147483648
        %v553 = vmul.f32 %v545, 1.442695
        %v554 = vpow.pop %v553
        %v555 = vmul.f32 %v546, 1.442695
        %v556 = vpow.pop %v555
        %v557 = vmul.f32 %v547, 1.442695
        %v558 = vpow.pop %v557
        %v559 = vmul.f32 %v548, 1.442695
        %v560 = vpow.pop %v559
        %v561 = vmul.f32 %v549, 1.442695
        %v562 = vpow.pop %v561
        %v563 = vmul.f32 %v550, 1.442695
        %v564 = vpow.pop %v563
        %v565 = vmul.f32 %v551, 1.442695
        %v566 = vpow.pop %v565
        %v567 = vmul.f32 %v552, 1.442695
        %v568 = vpow.pop %v567
        %v569 = vadd.f32 %v554, 1.0
        %v570 = vadd.f32 %v556, 1.0
        %v571 = vadd.f32 %v558, 1.0
        %v572 = vadd.f32 %v560, 1.0
        %v573 = vadd.f32 %v562, 1.0
        %v574 = vadd.f32 %v564, 1.0
        %v575 = vadd.f32 %v566, 1.0
        %v576 = vadd.f32 %v568, 1.0
        %v577 = vrcp.pop %v569
        %v578 = vmul.f32 1.0, %v577
        %v579 = vrcp.pop %v570
        %v580 = vmul.f32 1.0, %v579
        %v581 = vrcp.pop %v571
        %v582 = vmul.f32 1.0, %v581
        %v583 = vrcp.pop %v572
        %v584 = vmul.f32 1.0, %v583
        %v585 = vrcp.pop %v573
        %v586 = vmul.f32 1.0, %v585
        %v587 = vrcp.pop %v574
        %v588 = vmul.f32 1.0, %v587
        %v589 = vrcp.pop %v575
        %v590 = vmul.f32 1.0, %v589
        %v591 = vrcp.pop %v576
        %v592 = vmul.f32 1.0, %v591
        %v593 = vmul.f32 %v523, %v578
        %v594 = vmul.f32 %v525, %v580
        %v595 = vmul.f32 %v529, %v582
        %v596 = vmul.f32 %v531, %v584
        %v597 = vmul.f32 %v535, %v586
        %v598 = vmul.f32 %v537, %v588
        %v599 = vmul.f32 %v541, %v590
        %v600 = vmul.f32 %v543, %v592
        %v601 = vld [vmem:[%s6] sm:$0xff]
        %v602 = vld [vmem:[%s7] sm:$0xff]
        %604 = vset.pattern.permute.xlu0 0
        %605 = vperm.xlu0 %604, %v602
        %v606 = vpop.permute.xlu0 %605
        %vm608 = vcmask 261120
        %v610 = vsel %vm608, %v601, 0
        %612 = vmatprep.subr.mxu0 %v594
        %613 = vmatpush1.msra.mxu0 %v593
        %614 = vmatprep.subr.mxu0 %v596
        %615 = vmatpush1.msra.mxu0 %v595
        %616 = vmatprep.subr.mxu0 %v598
        %617 = vmatpush1.msra.mxu0 %v597
        %618 = vmatprep.subr.mxu0 %v600
        %619 = vmatpush1.msra.mxu0 %v599
        %620 = vmatprep.subr.mxu0 0.0
        %621 = vmatpush1.msra.mxu0 0.0
        %622 = vmatprep.subr.mxu0 0.0
        %623 = vmatpush1.msra.mxu0 0.0
        %624 = vmatprep.subr.mxu0 0.0
        %625 = vmatpush1.msra.mxu0 0.0
        %626 = vmatprep.subr.mxu0 0.0
        %627 = vmatpush1.msra.mxu0 0.0
        %628 = vmatprep.subr.mxu0 0.0
        %629 = vmatpush1.msra.mxu0 0.0
        %630 = vmatprep.subr.mxu0 0.0
        %631 = vmatpush1.msra.mxu0 0.0
        %632 = vmatprep.subr.mxu0 0.0
        %633 = vmatpush1.msra.mxu0 0.0
        %634 = vmatprep.subr.mxu0 0.0
        %635 = vmatpush1.msra.mxu0 0.0
        %636 = vmatprep.subr.mxu0 0.0
        %637 = vmatpush1.msra.mxu0 0.0
        %638 = vmatprep.subr.mxu0 0.0
        %639 = vmatpush1.msra.mxu0 0.0
        %640 = vmatprep.subr.mxu0 0.0
        %641 = vmatpush1.msra.mxu0 0.0
        %642 = vmatprep.subr.mxu0 0.0
        %643 = vmatpush1.msra.mxu0 0.0
        %644 = vmatprep.subr.mxu0 0.0
        %645 = vmatpush1.msra.mxu0 0.0
        %646 = vmatprep.subr.mxu0 0.0
        %647 = vmatpush1.msra.mxu0 0.0
        %648 = vmatprep.subr.mxu0 0.0
        %649 = vmatpush1.msra.mxu0 0.0
        %650 = vmatprep.subr.mxu0 0.0
        %651 = vmatpush1.msra.mxu0 0.0
        %652 = vmatprep.subr.mxu0 0.0
        %653 = vmatpush1.msra.mxu0 0.0
        %654 = vmatprep.subr.mxu0 0.0
        %655 = vmatpush1.msra.mxu0 0.0
        %656 = vmatprep.subr.mxu0 0.0
        %657 = vmatpush1.msra.mxu0 0.0
        %658 = vmatprep.subr.mxu0 0.0
        %659 = vmatpush1.msra.mxu0 0.0
        %660 = vmatprep.subr.mxu0 0.0
        %661 = vmatpush1.msra.mxu0 0.0
        %662 = vmatprep.subr.mxu0 0.0
        %663 = vmatpush1.msra.mxu0 0.0
        %664 = vmatprep.subr.mxu0 0.0
        %665 = vmatpush1.msra.mxu0 0.0
        %666 = vmatprep.subr.mxu0 0.0
        %667 = vmatpush1.msra.mxu0 0.0
        %668 = vmatprep.subr.mxu0 0.0
        %669 = vmatpush1.msra.mxu0 0.0
        %670 = vmatprep.subr.mxu0 0.0
        %671 = vmatpush1.msra.mxu0 0.0
        %672 = vmatprep.subr.mxu0 0.0
        %673 = vmatpush1.msra.mxu0 0.0
        %674 = vmatprep.subr.mxu0 0.0
        %675 = vmatpush1.msra.mxu0 0.0
        %676 = vmatprep.mubr.f32.mxu0 0.0
        %677 = vmatmul.mubr.f32.gmra.mrb[0].mxu0 %v610
        %v678 = vpop.f32.mrb[0].mxu0
        %v679 = vadd.f32 %v606, %v678
        %v680 = vpop.f32.mrb[0].mxu0
        %v681 = vadd.f32 %v606, %v680
        %682 = vdwg.mxu0
        %v683 = vsub.f32 %v679, %v386
        %v684 = vsub.f32 %v681, %v387
        %v685 = vmul.f32 %v683, %v683
        %v686 = vmul.f32 %v684, %v684
        %v687 = vadd.f32 %v685, %v686
        %688 = vadd.xlane.f32.xlu0 %v687
        %v689 = vpop.xlane.xlu0 %688
        %v690 = vrot.slane %v689, 4
        %v691 = vadd.f32 %v689, %v690
        %v692 = vrot.slane %v691, 2
        %v693 = vadd.f32 %v691, %v692
        %v694 = vrot.slane %v693, 1
        %v695 = vadd.f32 %v693, %v694
        %s696 = vtos %v695
        %v697 = vstv %s696
        %vm698 = vcmask 0
        %699 = vst.msk [vmem:[%s375] sm:$0x1] %vm698, %v697
        %p700 = scmp.lt.s32.totalorder %s20, 1
        %s701 = scalar_select %p700, %s20, 1
        %s702 = scalar_lea.vmem %s8, %s701
        // Predicated region
        $region57: #{tpu_custom_call.1} parent=51 // pred_check
          %p703 = pneg %p226
        $region58: #{tpu_custom_call.1} parent=51 // pred_check_branch
          %705 = sbr.rel (%p703) target = $region60
        $region59: #{tpu_custom_call.1} parent=51 // pred_region
          _
        $region60: #{tpu_custom_call.1} parent=51 // pred_fallthru
          _
      $region52: #{tpu_custom_call.1} parent=5 // pred_fallthru
        _
      %p706 = scmp.le.s32.totalorder 2, %s15
      // Predicated region
      $region61: #{tpu_custom_call.1} parent=5 // pred_check
        %p707 = pneg %p706
      $region62: #{tpu_custom_call.1} parent=5 // pred_check_branch
        %709 = sbr.rel (%p707) target = $region64
      $region63: #{tpu_custom_call.1} parent=5 // pred_region
        %s710 = ssub.s32 %s15, 2
        // Predicated region
        $region65: #{tpu_custom_call.1} parent=63 // pred_check
          %p711 = pneg %p232
        $region66: #{tpu_custom_call.1} parent=63 // pred_check_branch
          %713 = sbr.rel (%p711) target = $region68
        $region67: #{tpu_custom_call.1} parent=63 // pred_region
          %p714 = scmp.lt.s32.totalorder %s21, 1
          %s715 = scalar_select %p714, %s21, 1
          %s716 = scalar_lea.vmem %s8, %s715
        $region68: #{tpu_custom_call.1} parent=63 // pred_fallthru
          _
      $region64: #{tpu_custom_call.1} parent=5 // pred_fallthru
        _
    $region6: #{tpu_custom_call.1} parent=1 // loop_footer
      %s19 = sadd.s32 1, %s15
    $region7: #{tpu_custom_call.1} parent=1 // loop_footer_branch
      %14 = sbr.rel target = $region3
    $region8: #{tpu_custom_call.1} parent=1 // loop_exit
      _
    %717 = vsyncpa [#allocation3], 1
    %s718 = scalar_lea.sflag [#allocation3], 1
    %719 = vsyncpa %s718, 1

</llo_original>
